<compile_context>
chip_gen: v6e
topology: v6e:2x2x1
jax: 0.10.0
libtpu: 0.0.40
codegen_flags: <defaults>
</compile_context>

<pallas_src>
import jax
import jax.numpy as jnp
from jax.experimental import pallas as pl
from jax.experimental.pallas import tpu as pltpu


def tabular_predictor_kernel(xcat_ref, xcon_ref, wcat_ref, bcat_ref,
                             wcon_ref, bcon_ref, cat_out_ref, con_out_ref):
    # xcat_ref: (B*num_cat, D)   xcon_ref: (B*num_con, D)
    # wcat_ref: (D, U)  (pre-transposed)   bcat_ref: (1, U)
    # wcon_ref: (1, D)  (torch layout, used row-wise)   bcon_ref: (1, 1)
    # cat_out_ref: (B*num_cat, U)   con_out_ref: (B*num_con, 1)
    xcat = xcat_ref[...]
    xcon = xcon_ref[...]

    # Categorical classifier: single lane-dense matmul on the MXU + bias.
    cat_y = jnp.dot(xcat, wcat_ref[...], preferred_element_type=jnp.float32)
    cat_out_ref[...] = (cat_y + bcat_ref[...]).astype(cat_out_ref.dtype)

    # Continuous regressor (out_features=1): elementwise multiply + lane
    # reduction (VPU + XLU) instead of a 1-column MXU matmul.
    con_y = jnp.sum(xcon * wcon_ref[...], axis=-1, keepdims=True)
    con_out_ref[...] = (con_y + bcon_ref[...]).astype(con_out_ref.dtype)


def tabular_predictor_pallas(x, params, num_cat):
    """x: (B, N, D). Returns (cat_x (B, num_cat, U), con_x (B, num_con, 1))."""
    B, N, D = x.shape
    num_con = N - 1 - num_cat
    assert num_con >= 1, "need at least one continuous token"

    Wcat = params["Wcat"]          # torch layout (U, D)
    bcat = params["bcat"]          # (U,)
    Wcon = params["Wcon"]          # torch layout (1, D)
    bcon = params["bcon"]          # (1,)
    U = Wcat.shape[0]
    assert Wcat.shape == (U, D) and Wcon.shape == (1, D)

    # Wrapper-side layout plumbing (done once by XLA, not per kernel step):
    # drop CLS token, split cat/con tokens, flatten batch into rows, and
    # pre-transpose the classifier weight so the kernel has no transposes.
    x_body = x[:, 1:, :]
    x_cat = x_body[:, :num_cat, :].reshape(B * num_cat, D)
    x_con = x_body[:, num_cat:, :].reshape(B * num_con, D)
    Wcat_t = Wcat.T                                  # (D, U)
    bcat_2d = bcat.reshape(1, U)
    bcon_2d = bcon.reshape(1, 1)

    cat_flat, con_flat = pl.pallas_call(
        tabular_predictor_kernel,
        out_shape=(
            jax.ShapeDtypeStruct((B * num_cat, U), x.dtype),
            jax.ShapeDtypeStruct((B * num_con, 1), x.dtype),
        ),
        grid_spec=pltpu.PrefetchScalarGridSpec(
            num_scalar_prefetch=0,
            grid=(1,),                               # single step: whole batch at once
            in_specs=[
                pl.BlockSpec((B * num_cat, D), lambda i: (0, 0)),   # x_cat
                pl.BlockSpec((B * num_con, D), lambda i: (0, 0)),   # x_con
                pl.BlockSpec((D, U), lambda i: (0, 0)),             # Wcat (pre-T)
                pl.BlockSpec((1, U), lambda i: (0, 0)),             # bcat
                pl.BlockSpec((1, D), lambda i: (0, 0)),             # Wcon
                pl.BlockSpec((1, 1), lambda i: (0, 0)),             # bcon
            ],
            out_specs=[
                pl.BlockSpec((B * num_cat, U), lambda i: (0, 0)),
                pl.BlockSpec((B * num_con, 1), lambda i: (0, 0)),
            ],
        ),
        compiler_params=pltpu.CompilerParams(
            dimension_semantics=("arbitrary",)),
    )(x_cat, x_con, Wcat_t, bcat_2d, Wcon, bcon_2d)

    cat_x = cat_flat.reshape(B, num_cat, U)
    con_x = con_flat.reshape(B, num_con, 1)
    return cat_x, con_x


def tabular_predictor_reference(x, params, num_cat):
    """Pure-JAX mirror of the PyTorch forward."""
    xb = x[:, 1:, :]
    cat_x = xb[:, :num_cat] @ params["Wcat"].T + params["bcat"]
    con_x = xb[:, num_cat:] @ params["Wcon"].T + params["bcon"]
    return cat_x.astype(x.dtype), con_x.astype(x.dtype)


if __name__ == "__main__":
    # Small shapes consistent with the module:
    #   tabular_embedding_dim = 32, 4 categorical + 4 continuous features,
    #   input sequence = 1 CLS token + 8 feature tokens, batch = 2.
    cat_lengths_tabular = [3, 5, 4, 8]      # num_cat = 4, num_unique_cat = 20
    con_lengths_tabular = [1, 1, 1, 1]      # num_con = 4
    num_cat = len(cat_lengths_tabular)
    num_con = len(con_lengths_tabular)
    num_unique_cat = sum(cat_lengths_tabular)
    D = 32                                  # args.tabular_embedding_dim
    B = 2
    N = 1 + num_cat + num_con               # 9 tokens including CLS

    key = jax.random.PRNGKey(0)
    kx, kw1, kb1, kw2, kb2 = jax.random.split(key, 5)

    x = jax.random.normal(kx, (B, N, D), jnp.float32)

    # torch Linear layout (out_features, in_features); weights ~ N(0, 0.02) like
    # _init_weights. Biases get small random values to exercise the bias-add
    # path (the module init would zero them; forward semantics are unchanged).
    params = {
        "Wcat": jax.random.normal(kw1, (num_unique_cat, D), jnp.float32) * 0.02,
        "bcat": jax.random.normal(kb1, (num_unique_cat,), jnp.float32) * 0.02,
        "Wcon": jax.random.normal(kw2, (1, D), jnp.float32) * 0.02,
        "bcon": jax.random.normal(kb2, (1,), jnp.float32) * 0.02,
    }

    cat_out, con_out = tabular_predictor_pallas(x, params, num_cat)
    cat_out, con_out = jax.block_until_ready((cat_out, con_out))

    cat_ref, con_ref = tabular_predictor_reference(x, params, num_cat)
    assert cat_out.shape == (B, num_cat, num_unique_cat)
    assert con_out.shape == (B, num_con, 1)
    assert jnp.allclose(cat_out, cat_ref, atol=1e-4, rtol=1e-4), "cat mismatch"
    assert jnp.allclose(con_out, con_ref, atol=1e-4, rtol=1e-4), "con mismatch"

    print("KERNEL_OK")
</pallas_src>

<mosaic_0001>
module attributes {stable_mosaic.version = 11 : i64} {
  func.func @tabular_predictor_kernel(%arg0: i32, %arg1: memref<8x32xf32, #tpu.memory_space<vmem>>, %arg2: memref<8x32xf32, #tpu.memory_space<vmem>>, %arg3: memref<32x20xf32, #tpu.memory_space<vmem>>, %arg4: memref<1x20xf32, #tpu.memory_space<vmem>>, %arg5: memref<1x32xf32, #tpu.memory_space<vmem>>, %arg6: memref<1x1xf32, #tpu.memory_space<vmem>>, %arg7: memref<8x20xf32, #tpu.memory_space<vmem>>, %arg8: memref<8x1xf32, #tpu.memory_space<vmem>>) attributes {dimension_semantics = [#tpu.dimension_semantics<arbitrary>], iteration_bounds = array<i64: 1>, scalar_prefetch = 0 : i64, scratch_operands = 0 : i64, tpu.core_type = #tpu.core_type<tc>, window_params = [{pipeline_mode = #tpu.pipeline_mode<synchronous>, transform_indices = @transform_0, window_bounds = array<i64: 8, 32>}, {pipeline_mode = #tpu.pipeline_mode<synchronous>, transform_indices = @transform_1, window_bounds = array<i64: 8, 32>}, {pipeline_mode = #tpu.pipeline_mode<synchronous>, transform_indices = @transform_2, window_bounds = array<i64: 32, 20>}, {pipeline_mode = #tpu.pipeline_mode<synchronous>, transform_indices = @transform_3, window_bounds = array<i64: 1, 20>}, {pipeline_mode = #tpu.pipeline_mode<synchronous>, transform_indices = @transform_4, window_bounds = array<i64: 1, 32>}, {pipeline_mode = #tpu.pipeline_mode<synchronous>, transform_indices = @transform_5, window_bounds = array<i64: 1, 1>}, {pipeline_mode = #tpu.pipeline_mode<synchronous>, transform_indices = @transform_6, window_bounds = array<i64: 8, 20>}, {pipeline_mode = #tpu.pipeline_mode<synchronous>, transform_indices = @transform_7, window_bounds = array<i64: 8, 1>}]} {
    %c0 = arith.constant 0 : index
    %c0_0 = arith.constant 0 : index
    %0 = vector.load %arg1[%c0, %c0_0] : memref<8x32xf32, #tpu.memory_space<vmem>>, vector<8x32xf32>
    %c0_1 = arith.constant 0 : index
    %c0_2 = arith.constant 0 : index
    %1 = vector.load %arg2[%c0_1, %c0_2] : memref<8x32xf32, #tpu.memory_space<vmem>>, vector<8x32xf32>
    %c0_3 = arith.constant 0 : index
    %c0_4 = arith.constant 0 : index
    %2 = vector.load %arg3[%c0_3, %c0_4] : memref<32x20xf32, #tpu.memory_space<vmem>>, vector<32x20xf32>
    %cst = arith.constant dense<0.000000e+00> : vector<8x20xf32>
    %3 = tpu.matmul %0, %2, %cst {dimension_numbers = #tpu.dot_dimension_numbers<[1], [0], [0], [1], [0, 0, 1, 1], [], []>} : vector<8x32xf32>, vector<32x20xf32>, vector<8x20xf32> -> vector<8x20xf32>
    %c0_5 = arith.constant 0 : index
    %c0_6 = arith.constant 0 : index
    %4 = vector.load %arg4[%c0_5, %c0_6] : memref<1x20xf32, #tpu.memory_space<vmem>>, vector<1x20xf32>
    %5 = vector.broadcast %4 : vector<1x20xf32> to vector<8x20xf32>
    %6 = arith.addf %3, %5 : vector<8x20xf32>
    %c0_7 = arith.constant 0 : index
    %c0_8 = arith.constant 0 : index
    %7 = vector.load %arg7[%c0_7, %c0_8] : memref<8x20xf32, #tpu.memory_space<vmem>>, vector<8x20xf32>
    tpu.vector_store %arg7[%c0_7, %c0_8], %6 {strides = array<i32>} : memref<8x20xf32, #tpu.memory_space<vmem>>, vector<8x20xf32>,
    %c0_9 = arith.constant 0 : index
    %c0_10 = arith.constant 0 : index
    %8 = vector.load %arg5[%c0_9, %c0_10] : memref<1x32xf32, #tpu.memory_space<vmem>>, vector<1x32xf32>
    %9 = vector.broadcast %8 : vector<1x32xf32> to vector<8x32xf32>
    %10 = arith.mulf %1, %9 : vector<8x32xf32>
    %cst_11 = arith.constant dense<0.000000e+00> : vector<8xf32>
    %11 = vector.multi_reduction <add>, %10, %cst_11 [1] : vector<8x32xf32> to vector<8xf32>
    %12 = vector.shape_cast %11 : vector<8xf32> to vector<8x1xf32>
    %c0_12 = arith.constant 0 : index
    %c0_13 = arith.constant 0 : index
    %13 = vector.load %arg6[%c0_12, %c0_13] : memref<1x1xf32, #tpu.memory_space<vmem>>, vector<1x1xf32>
    %14 = vector.broadcast %13 : vector<1x1xf32> to vector<8x1xf32>
    %15 = arith.addf %12, %14 : vector<8x1xf32>
    %c0_14 = arith.constant 0 : index
    %c0_15 = arith.constant 0 : index
    %16 = vector.load %arg8[%c0_14, %c0_15] : memref<8x1xf32, #tpu.memory_space<vmem>>, vector<8x1xf32>
    tpu.vector_store %arg8[%c0_14, %c0_15], %15 {strides = array<i32>} : memref<8x1xf32, #tpu.memory_space<vmem>>, vector<8x1xf32>,
    return
  }
  func.func @transform_0(%arg0: i32) -> (i32, i32) {
    %c0_i32 = arith.constant 0 : i32
    %c0_i32_0 = arith.constant 0 : i32
    %c0_i32_1 = arith.constant 0 : i32
    return %c0_i32, %c0_i32_0 : i32, i32
  }
  func.func @transform_1(%arg0: i32) -> (i32, i32) {
    %c0_i32 = arith.constant 0 : i32
    %c0_i32_0 = arith.constant 0 : i32
    %c0_i32_1 = arith.constant 0 : i32
    return %c0_i32, %c0_i32_0 : i32, i32
  }
  func.func @transform_2(%arg0: i32) -> (i32, i32) {
    %c0_i32 = arith.constant 0 : i32
    %c0_i32_0 = arith.constant 0 : i32
    %c0_i32_1 = arith.constant 0 : i32
    return %c0_i32, %c0_i32_0 : i32, i32
  }
  func.func @transform_3(%arg0: i32) -> (i32, i32) {
    %c0_i32 = arith.constant 0 : i32
    %c0_i32_0 = arith.constant 0 : i32
    %c0_i32_1 = arith.constant 0 : i32
    return %c0_i32, %c0_i32_0 : i32, i32
  }
  func.func @transform_4(%arg0: i32) -> (i32, i32) {
    %c0_i32 = arith.constant 0 : i32
    %c0_i32_0 = arith.constant 0 : i32
    %c0_i32_1 = arith.constant 0 : i32
    return %c0_i32, %c0_i32_0 : i32, i32
  }
  func.func @transform_5(%arg0: i32) -> (i32, i32) {
    %c0_i32 = arith.constant 0 : i32
    %c0_i32_0 = arith.constant 0 : i32
    %c0_i32_1 = arith.constant 0 : i32
    return %c0_i32, %c0_i32_0 : i32, i32
  }
  func.func @transform_6(%arg0: i32) -> (i32, i32) {
    %c0_i32 = arith.constant 0 : i32
    %c0_i32_0 = arith.constant 0 : i32
    %c0_i32_1 = arith.constant 0 : i32
    return %c0_i32, %c0_i32_0 : i32, i32
  }
  func.func @transform_7(%arg0: i32) -> (i32, i32) {
    %c0_i32 = arith.constant 0 : i32
    %c0_i32_0 = arith.constant 0 : i32
    %c0_i32_1 = arith.constant 0 : i32
    return %c0_i32, %c0_i32_0 : i32, i32
  }
}

</mosaic_0001>

<llo_original>
// kernel: tpu_custom_call.1
$region0: #{tpu_custom_call.1}
  #allocation0 [shape = 'u32[]', space=smem, size = 0x4, offset = 0x4, fixed_abs, tag = 'smem constant byte address 0x4 - core index']
  #allocation1 [shape = 'u32[144,128]{1,0:T(1,128)}', space=vmem, size = 0x12000, scoped, tag = 'internal scratch']
  #allocation2 [shape = 'f32[1,1]{1,0:T(1,128)S(1)}', space=vmem, size = 0x200, scoped, tag = 'scoped memory for tpu_custom_call.1']
  %s0 = inlined_call_operand.vmem [shape: f32[8,32], index: 0, kind: input, shape index: {}]
  %s1 = inlined_call_operand.vmem [shape: f32[8,32], index: 1, kind: input, shape index: {}]
  %s2 = inlined_call_operand.vmem [shape: f32[32,20], index: 2, kind: input, shape index: {}]
  %s3 = inlined_call_operand.vmem [shape: f32[1,20], index: 3, kind: input, shape index: {}]
  %s4 = inlined_call_operand.vmem [shape: f32[1,32], index: 4, kind: input, shape index: {}]
  %s5 = inlined_call_operand.<no memory space> [shape: f32[1,1], index: 5, kind: input, shape index: {}]
  %s6 = inlined_call_operand.hbm [shape: f32[8,20], index: 6, kind: output, shape index: {0}]
  %s7 = inlined_call_operand.vmem [shape: f32[8,1], index: 7, kind: output, shape index: {1}]
  %8 = xla_tuple %s6, %s7
  %s9 = sld [smem:[#allocation0]]
  $region42: #{tpu_custom_call.1} parent=0
    _
  %s11 = ssub.s32 1, %s9
  %s12 = scalar_select 0, %s11, %s9
  %v13 = vstv %s5
  %14 = vst [vmem:[#allocation2] sm:$0x1] %v13
  $region1: #{tpu_custom_call.1} parent=0
    #allocation3 [shape = 'u8[4096]{0}', space=vmem, size = 0x1000, scoped, tag = 'output window, operand 0, single buffered']
    #allocation4 [shape = 's32[1]{0}', space=sflag, size = 0x4, scoped, tag = 'scoped memory for tpu_custom_call.1']
    %15 = vsyncpa [#allocation4], 0
    // Predicated region
    $region2: #{tpu_custom_call.1} parent=1 // pred_check
      _
    $region3: #{tpu_custom_call.1} parent=1 // pred_check_branch
      %17 = sbr.rel (0) target = $region5
    $region4: #{tpu_custom_call.1} parent=1 // pred_region
      _
    $region5: #{tpu_custom_call.1} parent=1 // pred_fallthru
      _
    // Predicated region
    $region6: #{tpu_custom_call.1} parent=1 // pred_check
      _
    $region7: #{tpu_custom_call.1} parent=1 // pred_check_branch
      %19 = sbr.rel (0) target = $region9
    $region8: #{tpu_custom_call.1} parent=1 // pred_region
      _
    $region9: #{tpu_custom_call.1} parent=1 // pred_fallthru
      _
    // Predicated region
    $region10: #{tpu_custom_call.1} parent=1 // pred_check
      _
    $region11: #{tpu_custom_call.1} parent=1 // pred_check_branch
      %21 = sbr.rel (0) target = $region13
    $region12: #{tpu_custom_call.1} parent=1 // pred_region
      _
    $region13: #{tpu_custom_call.1} parent=1 // pred_fallthru
      _
    // Predicated region
    $region14: #{tpu_custom_call.1} parent=1 // pred_check
      _
    $region15: #{tpu_custom_call.1} parent=1 // pred_check_branch
      %23 = sbr.rel (0) target = $region17
    $region16: #{tpu_custom_call.1} parent=1 // pred_region
      _
    $region17: #{tpu_custom_call.1} parent=1 // pred_fallthru
      _
    // Predicated region
    $region18: #{tpu_custom_call.1} parent=1 // pred_check
      _
    $region19: #{tpu_custom_call.1} parent=1 // pred_check_branch
      %25 = sbr.rel (0) target = $region21
    $region20: #{tpu_custom_call.1} parent=1 // pred_region
      _
    $region21: #{tpu_custom_call.1} parent=1 // pred_fallthru
      _
    // Predicated region
    $region22: #{tpu_custom_call.1} parent=1 // pred_check
      _
    $region23: #{tpu_custom_call.1} parent=1 // pred_check_branch
      %27 = sbr.rel (0) target = $region25
    $region24: #{tpu_custom_call.1} parent=1 // pred_region
      _
    $region25: #{tpu_custom_call.1} parent=1 // pred_fallthru
      _
    %v28 = vld [vmem:[%s0] sm:$0xff]
    %v29 = vld [vmem:[%s1] sm:$0xff]
    %v30 = vld [vmem:[%s2] sm:$0xff]
    %v31 = vld [vmem:[%s2 + $0x8] sm:$0xff]
    %v32 = vld [vmem:[%s2 + $0x10] sm:$0xff]
    %v33 = vld [vmem:[%s2 + $0x18] sm:$0xff]
    %v34 = vld [vmem:[%s3] sm:$0x1]
    %v36 = vlaneseq
    %v37 = vshrl.u32 %v36, 7
    %v38 = vsub.s32 0, %v37
    %v39 = vrot.slane %v34, %v38
    %vm41 = vcmask 261120
    %v43 = vsel %vm41, %v28, 0
    %45 = vmatprep.subr.mxu0 0.0
    %46 = vmatpush1.msra.mxu0 0.0
    %47 = vmatprep.subr.mxu0 0.0
    %48 = vmatpush1.msra.mxu0 0.0
    %49 = vmatprep.subr.mxu0 0.0
    %50 = vmatpush1.msra.mxu0 0.0
    %51 = vmatprep.subr.mxu0 0.0
    %52 = vmatpush1.msra.mxu0 0.0
    %53 = vmatprep.subr.mxu0 0.0
    %54 = vmatpush1.msra.mxu0 0.0
    %55 = vmatprep.subr.mxu0 0.0
    %56 = vmatpush1.msra.mxu0 0.0
    %57 = vmatprep.subr.mxu0 0.0
    %58 = vmatpush1.msra.mxu0 0.0
    %59 = vmatprep.subr.mxu0 0.0
    %60 = vmatpush1.msra.mxu0 0.0
    %61 = vmatprep.subr.mxu0 0.0
    %62 = vmatpush1.msra.mxu0 0.0
    %63 = vmatprep.subr.mxu0 0.0
    %64 = vmatpush1.msra.mxu0 0.0
    %65 = vmatprep.subr.mxu0 0.0
    %66 = vmatpush1.msra.mxu0 0.0
    %67 = vmatprep.subr.mxu0 0.0
    %68 = vmatpush1.msra.mxu0 0.0
    %69 = vmatprep.subr.mxu0 0.0
    %70 = vmatpush1.msra.mxu0 %v33
    %71 = vmatprep.subr.mxu0 0.0
    %72 = vmatpush1.msra.mxu0 %v32
    %73 = vmatprep.subr.mxu0 0.0
    %74 = vmatpush1.msra.mxu0 %v31
    %75 = vmatprep.subr.mxu0 0.0
    %76 = vmatpush1.msra.mxu0 %v30
    %77 = vmatprep.subr.mxu0 0.0
    %78 = vmatpush2.msra.mxu0 0.0
    %79 = vmatprep.subr.mxu0 0.0
    %80 = vmatpush2.msra.mxu0 0.0
    %81 = vmatprep.subr.mxu0 0.0
    %82 = vmatpush2.msra.mxu0 0.0
    %83 = vmatprep.subr.mxu0 0.0
    %84 = vmatpush2.msra.mxu0 0.0
    %85 = vmatprep.subr.mxu0 0.0
    %86 = vmatpush2.msra.mxu0 0.0
    %87 = vmatprep.subr.mxu0 0.0
    %88 = vmatpush2.msra.mxu0 0.0
    %89 = vmatprep.subr.mxu0 0.0
    %90 = vmatpush2.msra.mxu0 0.0
    %91 = vmatprep.subr.mxu0 0.0
    %92 = vmatpush2.msra.mxu0 0.0
    %93 = vmatprep.subr.mxu0 0.0
    %94 = vmatpush2.msra.mxu0 0.0
    %95 = vmatprep.subr.mxu0 0.0
    %96 = vmatpush2.msra.mxu0 0.0
    %97 = vmatprep.subr.mxu0 0.0
    %98 = vmatpush2.msra.mxu0 0.0
    %99 = vmatprep.subr.mxu0 0.0
    %100 = vmatpush2.msra.mxu0 0.0
    %101 = vmatprep.subr.mxu0 0.0
    %102 = vmatpush2.msra.mxu0 0.0
    %103 = vmatprep.subr.mxu0 0.0
    %104 = vmatpush2.msra.mxu0 0.0
    %105 = vmatprep.subr.mxu0 0.0
    %106 = vmatpush2.msra.mxu0 0.0
    %107 = vmatprep.subr.mxu0 0.0
    %108 = vmatpush2.msra.mxu0 0.0
    %109 = vmatprep.mubr.f32.mxu0 0.0
    %110 = vmatmul.mubr.f32.gmra.mxu0 %v43
    %v111 = vpop.f32.mrf.mxu0
    %v112 = vadd.f32 %v39, %v111
    %v113 = vpop.f32.mrf.mxu0
    %114 = vdwg.mxu0
    %vm115 = vcmask 162816
    %116 = vst.msk [vmem:[#allocation3] sm:$0xff] %vm115, %v112
    %v117 = vld [vmem:[%s4] sm:$0x1]
    %v119 = vlaneseq
    %v120 = vshrl.u32 %v119, 7
    %v121 = vsub.s32 0, %v120
    %v122 = vrot.slane %v117, %v121
    %v124 = vmul.f32 %v29, %v122
    %v125 = vsel %vm41, %v124, 0.0
    %126 = vadd.xlane.f32.xlu0 %v125
    %v127 = vpop.xlane.xlu0 %126
    %v128 = vld [vmem:[#allocation2] sm:$0x1]
    %v130 = vlaneseq
    %v131 = vshrl.u32 %v130, 7
    %v132 = vsub.s32 0, %v131
    %v133 = vrot.slane %v128, %v132
    %v135 = vadd.f32 %v127, %v133
    %vm136 = vcmask 7168
    %137 = vst.msk [vmem:[%s7] sm:$0xff] %vm136, %v135
    // Predicated region
    $region26: #{tpu_custom_call.1} parent=1 // pred_check
      _
    $region27: #{tpu_custom_call.1} parent=1 // pred_check_branch
      %139 = sbr.rel (0) target = $region29
    $region28: #{tpu_custom_call.1} parent=1 // pred_region
      %s141 = ssub.s32 128, 128
      %142 = vsyncadd [#allocation4], %s141
      %s144 = sshll.u32 [#allocation3], 4
      %s145 = int_to_ptr.vmem [resolvable:$true] %s144
      %147 = dma.vmem_to_hbm [thread:$0]  %s145, 128, %s6, [#allocation4]
    $region29: #{tpu_custom_call.1} parent=1 // pred_fallthru
      _
    // Predicated region
    $region30: #{tpu_custom_call.1} parent=1 // pred_check
      _
    $region31: #{tpu_custom_call.1} parent=1 // pred_check_branch
      %149 = sbr.rel (0) target = $region33
    $region32: #{tpu_custom_call.1} parent=1 // pred_region
      _
    $region33: #{tpu_custom_call.1} parent=1 // pred_fallthru
      _
    // Predicated region
    $region34: #{tpu_custom_call.1} parent=1 // pred_check
      _
    $region35: #{tpu_custom_call.1} parent=1 // pred_check_branch
      %151 = sbr.rel (0) target = $region37
    $region36: #{tpu_custom_call.1} parent=1 // pred_region
      %152 = dma.done [#allocation4], 128
    $region37: #{tpu_custom_call.1} parent=1 // pred_fallthru
      _
    // Predicated region
    $region38: #{tpu_custom_call.1} parent=1 // pred_check
      _
    $region39: #{tpu_custom_call.1} parent=1 // pred_check_branch
      %154 = sbr.rel (0) target = $region41
    $region40: #{tpu_custom_call.1} parent=1 // pred_region
      _
    $region41: #{tpu_custom_call.1} parent=1 // pred_fallthru
      _
    %155 = vsyncpa [#allocation4], 1

</llo_original>
